<compile_context>
chip_gen: v5e
topology: v5e:2x2
jax: 0.10.0
libtpu: 0.0.40
codegen_flags: <defaults>
</compile_context>

<pallas_src>
import jax
import jax.numpy as jnp
from jax.experimental import pallas as pl
from jax.experimental.pallas import tpu as pltpu

LN_EPS = 1e-5          # torch.nn.LayerNorm default
_TB_MAX = 512          # batch-tile cap (multiple of 8/128, comfortably inside VMEM)


def _round_up(x, m):
    return ((x + m - 1) // m) * m


def _pose_res_gate_fusion_kernel(
    pose_ref,      # [TB, P]  f32 pose features (P == H), also the residual
    img_ref,       # [TB, I]  f32 image features
    w_img_ref,     # [I, H]   bf16 img_compress Linear weight (transposed)
    w_gate_ref,    # [P, H]   bf16 gate Linear weight (transposed)
    prm_ref,       # [4, H]   f32 packed params: rows = b_img, gamma, beta, b_gate
    out_ref,       # [TB, H]
):
    pose = pose_ref[...].astype(jnp.float32)     # keep residual path in f32

    b_img = prm_ref[0:1, :]
    gamma = prm_ref[1:2, :]
    beta = prm_ref[2:3, :]
    b_gate = prm_ref[3:4, :]

    # --- img_compress: Linear(img_dim -> hidden); bf16 MXU, f32 accumulate ---
    img_lin = jnp.dot(img_ref[...].astype(jnp.bfloat16), w_img_ref[...],
                      preferred_element_type=jnp.float32) + b_img

    # --- LayerNorm over hidden (lane) dim: biased variance, eps=1e-5, then ReLU ---
    mean = jnp.mean(img_lin, axis=-1, keepdims=True)            # XLU lane reduce
    centered = img_lin - mean
    var = jnp.mean(centered * centered, axis=-1, keepdims=True)
    scale = gamma * jax.lax.rsqrt(var + LN_EPS)                 # folded LN scale (EUP rsqrt)
    img_c = jnp.maximum(centered * scale + beta, 0.0)

    # --- gate_net: Linear(pose_dim -> hidden) + Sigmoid ---
    gate_lin = jnp.dot(pose.astype(jnp.bfloat16), w_gate_ref[...],
                       preferred_element_type=jnp.float32) + b_gate
    gate = jax.nn.sigmoid(gate_lin)                              # EUP

    # --- residual gated fusion (f32) ---
    out_ref[...] = (pose + gate * img_c).astype(out_ref.dtype)


def pose_res_gate_fusion(pose_feat, img_feat, params):
    """params: dict with w_img [I,H], b_img [H], gamma [H], beta [H], w_gate [P,H], b_gate [H]."""
    B, P = pose_feat.shape
    Bi, I = img_feat.shape
    assert Bi == B
    H = params["w_img"].shape[1]
    assert P == H, "residual add requires pose_dim == hidden_dim"
    assert params["w_gate"].shape == (P, H)
    # NOTE: for lane-dense stores H should be a multiple of 128 (module default H=128 is).
    # TODO(synk): mask the LN reduction if a non-128-multiple hidden_dim is ever needed.

    # Batch tiling: if the whole batch fits in one tile, use it as-is (block equals the
    # full batch extent -> no (8,128) constraint, no padding, no wrapper copies).
    # Otherwise tile at _TB_MAX (multiple of 8) and pad the last tile.
    if B <= _TB_MAX:
        tb, num_tiles, b_pad = B, 1, B
        pose_in, img_in = pose_feat, img_feat
    else:
        tb = _TB_MAX
        num_tiles = pl.cdiv(B, tb)
        b_pad = num_tiles * tb
        pose_in = jnp.pad(pose_feat, ((0, b_pad - B), (0, 0)))
        img_in = jnp.pad(img_feat, ((0, b_pad - B), (0, 0)))

    # Weights in bf16: halves weight DMA (dominant traffic at small/medium B) and gets
    # full-rate bf16 MXU. In production store the params in bf16 so this cast is free.
    w_img = params["w_img"].astype(jnp.bfloat16)
    w_gate = params["w_gate"].astype(jnp.bfloat16)
    # Bias / LN params packed into one (4, H) f32 block: single resident DMA, lane-major
    # rows broadcast cleanly across sublanes.
    prm = jnp.stack(
        [params["b_img"].astype(jnp.float32),
         params["gamma"].astype(jnp.float32),
         params["beta"].astype(jnp.float32),
         params["b_gate"].astype(jnp.float32)], axis=0)          # (4, H)

    tiled = lambda cols: pl.BlockSpec((tb, cols), lambda b: (b, 0))       # batch-tiled
    resident = lambda shape: pl.BlockSpec(shape, lambda b: (0, 0))        # fetched once

    act_bytes = jnp.dtype(pose_in.dtype).itemsize
    flops = 2 * b_pad * (I + P) * H
    bytes_accessed = (b_pad * (I + P + H) * act_bytes      # activations in/out
                      + (I + P) * H * 2                    # bf16 weights
                      + 4 * H * 4)                         # packed biases / LN params
    vmem_needed = (2 * tb * (I + P) * act_bytes            # double-buffered input tiles
                   + 2 * tb * H * act_bytes                # double-buffered output tile
                   + 2 * (I + P) * H * 2                   # resident bf16 weights
                   + 2 * 8 * _round_up(H, 128) * 4         # padded (4,H) param block
                   + (1 << 20))                            # scratch headroom
    vmem_limit = int(min(max(vmem_needed, 32 * 1024 * 1024), 64 * 1024 * 1024))

    out = pl.pallas_call(
        _pose_res_gate_fusion_kernel,
        out_shape=jax.ShapeDtypeStruct((b_pad, H), pose_feat.dtype),
        grid=(num_tiles,),
        in_specs=[
            tiled(P),                 # pose
            tiled(I),                 # img
            resident((I, H)),         # w_img
            resident((P, H)),         # w_gate
            resident((4, H)),         # packed b_img / gamma / beta / b_gate
        ],
        out_specs=tiled(H),
        compiler_params=pltpu.CompilerParams(
            dimension_semantics=("parallel",),          # v7x: split batch tiles over 2 TCs
            vmem_limit_bytes=vmem_limit),
        cost_estimate=pl.CostEstimate(
            flops=flops,
            transcendentals=2 * b_pad * H,              # sigmoid exp + LN rsqrt
            bytes_accessed=bytes_accessed),
    )(pose_in, img_in, w_img, w_gate, prm)

    return out[:B] if b_pad != B else out


def _reference(pose_feat, img_feat, params):
    """Pure-JAX reference mirroring the kernel numerics (bf16 matmul, f32 tail)."""
    w_img = params["w_img"].astype(jnp.bfloat16)
    w_gate = params["w_gate"].astype(jnp.bfloat16)
    img_lin = jnp.dot(img_feat.astype(jnp.bfloat16), w_img,
                      preferred_element_type=jnp.float32) + params["b_img"]
    mean = jnp.mean(img_lin, axis=-1, keepdims=True)
    var = jnp.mean((img_lin - mean) ** 2, axis=-1, keepdims=True)
    img_ln = (img_lin - mean) * jax.lax.rsqrt(var + LN_EPS)
    img_c = jnp.maximum(img_ln * params["gamma"] + params["beta"], 0.0)
    gate = jax.nn.sigmoid(jnp.dot(pose_feat.astype(jnp.bfloat16), w_gate,
                                  preferred_element_type=jnp.float32) + params["b_gate"])
    return pose_feat + gate * img_c


def init_params(key, pose_dim, img_dim, hidden_dim, dtype=jnp.float32):
    k1, k2, k3, k4 = jax.random.split(key, 4)
    s_img = 1.0 / jnp.sqrt(img_dim)
    s_pose = 1.0 / jnp.sqrt(pose_dim)
    return {
        "w_img": jax.random.uniform(k1, (img_dim, hidden_dim), dtype, -s_img, s_img),
        "b_img": jax.random.uniform(k2, (hidden_dim,), dtype, -s_img, s_img),
        "gamma": jnp.ones((hidden_dim,), dtype),
        "beta": jnp.zeros((hidden_dim,), dtype),
        "w_gate": jax.random.uniform(k3, (pose_dim, hidden_dim), dtype, -s_pose, s_pose),
        "b_gate": jax.random.uniform(k4, (hidden_dim,), dtype, -s_pose, s_pose),
    }


if __name__ == "__main__":
    # Module defaults: pose_dim == hidden_dim == 128, img_dim == 1200.
    # B=12 (not a multiple of 8) exercises the single-tile full-batch block path.
    B, POSE_DIM, IMG_DIM, HIDDEN_DIM = 12, 128, 1200, 128

    key = jax.random.PRNGKey(0)
    kp, ki, kw = jax.random.split(key, 3)

    pose_feat = jax.random.normal(kp, (B, POSE_DIM), jnp.float32)
    img_feat = jax.random.normal(ki, (B, IMG_DIM), jnp.float32)
    params = init_params(kw, POSE_DIM, IMG_DIM, HIDDEN_DIM)

    out = pose_res_gate_fusion(pose_feat, img_feat, params)
    out = jax.block_until_ready(out)

    ref = _reference(pose_feat, img_feat, params)
    assert out.shape == (B, HIDDEN_DIM)
    assert jnp.allclose(out, ref, atol=2e-3, rtol=2e-3), "mismatch vs reference"

    print("KERNEL_OK")
</pallas_src>

<mosaic_0001>
module attributes {stable_mosaic.version = 11 : i64} {
  func.func @_pose_res_gate_fusion_kernel(%arg0: i32, %arg1: memref<12x128xf32, #tpu.memory_space<vmem>>, %arg2: memref<12x1200xf32, #tpu.memory_space<vmem>>, %arg3: memref<1200x128xbf16, #tpu.memory_space<vmem>>, %arg4: memref<128x128xbf16, #tpu.memory_space<vmem>>, %arg5: memref<4x128xf32, #tpu.memory_space<vmem>>, %arg6: memref<12x128xf32, #tpu.memory_space<vmem>>) attributes {dimension_semantics = [#tpu.dimension_semantics<parallel>], iteration_bounds = array<i64: 1>, scalar_prefetch = 0 : i64, scratch_operands = 0 : i64, tpu.core_type = #tpu.core_type<tc>, window_params = [{transform_indices = @transform_0, window_bounds = array<i64: 12, 128>}, {transform_indices = @transform_1, window_bounds = array<i64: 12, 1200>}, {pipeline_mode = #tpu.pipeline_mode<synchronous>, transform_indices = @transform_2, window_bounds = array<i64: 1200, 128>}, {pipeline_mode = #tpu.pipeline_mode<synchronous>, transform_indices = @transform_3, window_bounds = array<i64: 128, 128>}, {pipeline_mode = #tpu.pipeline_mode<synchronous>, transform_indices = @transform_4, window_bounds = array<i64: 4, 128>}, {transform_indices = @transform_5, window_bounds = array<i64: 12, 128>}]} {
    %c0 = arith.constant 0 : index
    %c0_0 = arith.constant 0 : index
    %0 = vector.load %arg1[%c0, %c0_0] : memref<12x128xf32, #tpu.memory_space<vmem>>, vector<12x128xf32>
    %c0_1 = arith.constant 0 : index
    %c0_2 = arith.constant 0 : index
    %1 = vector.load %arg5[%c0_1, %c0_2] : memref<4x128xf32, #tpu.memory_space<vmem>>, vector<1x128xf32>
    %c1 = arith.constant 1 : index
    %c0_3 = arith.constant 0 : index
    %2 = vector.load %arg5[%c1, %c0_3] : memref<4x128xf32, #tpu.memory_space<vmem>>, vector<1x128xf32>
    %c2 = arith.constant 2 : index
    %c0_4 = arith.constant 0 : index
    %3 = vector.load %arg5[%c2, %c0_4] : memref<4x128xf32, #tpu.memory_space<vmem>>, vector<1x128xf32>
    %c3 = arith.constant 3 : index
    %c0_5 = arith.constant 0 : index
    %4 = vector.load %arg5[%c3, %c0_5] : memref<4x128xf32, #tpu.memory_space<vmem>>, vector<1x128xf32>
    %c0_6 = arith.constant 0 : index
    %c0_7 = arith.constant 0 : index
    %5 = vector.load %arg2[%c0_6, %c0_7] : memref<12x1200xf32, #tpu.memory_space<vmem>>, vector<12x1200xf32>
    %6 = arith.truncf %5 : vector<12x1200xf32> to vector<12x1200xbf16>
    %c0_8 = arith.constant 0 : index
    %c0_9 = arith.constant 0 : index
    %7 = vector.load %arg3[%c0_8, %c0_9] : memref<1200x128xbf16, #tpu.memory_space<vmem>>, vector<1200x128xbf16>
    %cst = arith.constant dense<0.000000e+00> : vector<12x128xf32>
    %8 = tpu.matmul %6, %7, %cst {dimension_numbers = #tpu.dot_dimension_numbers<[1], [0], [0], [1], [0, 0, 1, 1], [], []>} : vector<12x1200xbf16>, vector<1200x128xbf16>, vector<12x128xf32> -> vector<12x128xf32>
    %9 = vector.broadcast %1 : vector<1x128xf32> to vector<12x128xf32>
    %10 = arith.addf %8, %9 : vector<12x128xf32>
    %cst_10 = arith.constant dense<0.000000e+00> : vector<12xf32>
    %11 = vector.multi_reduction <add>, %10, %cst_10 [1] : vector<12x128xf32> to vector<12xf32>
    %12 = vector.shape_cast %11 : vector<12xf32> to vector<12x1xf32>
    %cst_11 = arith.constant 1.280000e+02 : f32
    %13 = vector.broadcast %cst_11 : f32 to vector<12x1xf32>
    %14 = arith.divf %12, %13 : vector<12x1xf32>
    %15 = vector.broadcast %14 : vector<12x1xf32> to vector<12x128xf32>
    %16 = arith.subf %10, %15 : vector<12x128xf32>
    %17 = arith.mulf %16, %16 : vector<12x128xf32>
    %cst_12 = arith.constant dense<0.000000e+00> : vector<12xf32>
    %18 = vector.multi_reduction <add>, %17, %cst_12 [1] : vector<12x128xf32> to vector<12xf32>
    %19 = vector.shape_cast %18 : vector<12xf32> to vector<12x1xf32>
    %cst_13 = arith.constant 1.280000e+02 : f32
    %20 = vector.broadcast %cst_13 : f32 to vector<12x1xf32>
    %21 = arith.divf %19, %20 : vector<12x1xf32>
    %cst_14 = arith.constant 9.99999974E-6 : f32
    %22 = vector.broadcast %cst_14 : f32 to vector<12x1xf32>
    %23 = arith.addf %21, %22 : vector<12x1xf32>
    %24 = math.rsqrt %23 : vector<12x1xf32>
    %25 = vector.broadcast %2 : vector<1x128xf32> to vector<12x128xf32>
    %26 = vector.broadcast %24 : vector<12x1xf32> to vector<12x128xf32>
    %27 = arith.mulf %25, %26 : vector<12x128xf32>
    %28 = arith.mulf %16, %27 : vector<12x128xf32>
    %29 = vector.broadcast %3 : vector<1x128xf32> to vector<12x128xf32>
    %30 = arith.addf %28, %29 : vector<12x128xf32>
    %cst_15 = arith.constant 0.000000e+00 : f32
    %31 = vector.broadcast %cst_15 : f32 to vector<12x128xf32>
    %32 = arith.maximumf %30, %31 : vector<12x128xf32>
    %33 = arith.truncf %0 : vector<12x128xf32> to vector<12x128xbf16>
    %c0_16 = arith.constant 0 : index
    %c0_17 = arith.constant 0 : index
    %34 = vector.load %arg4[%c0_16, %c0_17] : memref<128x128xbf16, #tpu.memory_space<vmem>>, vector<128x128xbf16>
    %cst_18 = arith.constant dense<0.000000e+00> : vector<12x128xf32>
    %35 = tpu.matmul %33, %34, %cst_18 {dimension_numbers = #tpu.dot_dimension_numbers<[1], [0], [0], [1], [0, 0, 1, 1], [], []>} : vector<12x128xbf16>, vector<128x128xbf16>, vector<12x128xf32> -> vector<12x128xf32>
    %36 = vector.broadcast %4 : vector<1x128xf32> to vector<12x128xf32>
    %37 = arith.addf %35, %36 : vector<12x128xf32>
    %38 = arith.negf %37 : vector<12x128xf32>
    %39 = math.exp %38 : vector<12x128xf32>
    %cst_19 = arith.constant 1.000000e+00 : f32
    %40 = vector.broadcast %cst_19 : f32 to vector<12x128xf32>
    %41 = arith.addf %40, %39 : vector<12x128xf32>
    %42 = arith.divf %40, %41 : vector<12x128xf32>
    %43 = arith.mulf %42, %32 : vector<12x128xf32>
    %44 = arith.addf %0, %43 : vector<12x128xf32>
    %c0_20 = arith.constant 0 : index
    %c0_21 = arith.constant 0 : index
    %45 = vector.load %arg6[%c0_20, %c0_21] : memref<12x128xf32, #tpu.memory_space<vmem>>, vector<12x128xf32>
    tpu.vector_store %arg6[%c0_20, %c0_21], %44 {strides = array<i32>} : memref<12x128xf32, #tpu.memory_space<vmem>>, vector<12x128xf32>,
    return
  }
  func.func @transform_0(%arg0: i32) -> (i32, i32) {
    %c0_i32 = arith.constant 0 : i32
    %c0_i32_0 = arith.constant 0 : i32
    return %arg0, %c0_i32 : i32, i32
  }
  func.func @transform_1(%arg0: i32) -> (i32, i32) {
    %c0_i32 = arith.constant 0 : i32
    %c0_i32_0 = arith.constant 0 : i32
    return %arg0, %c0_i32 : i32, i32
  }
  func.func @transform_2(%arg0: i32) -> (i32, i32) {
    %c0_i32 = arith.constant 0 : i32
    %c0_i32_0 = arith.constant 0 : i32
    %c0_i32_1 = arith.constant 0 : i32
    return %c0_i32, %c0_i32_0 : i32, i32
  }
  func.func @transform_3(%arg0: i32) -> (i32, i32) {
    %c0_i32 = arith.constant 0 : i32
    %c0_i32_0 = arith.constant 0 : i32
    %c0_i32_1 = arith.constant 0 : i32
    return %c0_i32, %c0_i32_0 : i32, i32
  }
  func.func @transform_4(%arg0: i32) -> (i32, i32) {
    %c0_i32 = arith.constant 0 : i32
    %c0_i32_0 = arith.constant 0 : i32
    %c0_i32_1 = arith.constant 0 : i32
    return %c0_i32, %c0_i32_0 : i32, i32
  }
  func.func @transform_5(%arg0: i32) -> (i32, i32) {
    %c0_i32 = arith.constant 0 : i32
    %c0_i32_0 = arith.constant 0 : i32
    return %arg0, %c0_i32 : i32, i32
  }
}

</mosaic_0001>

<llo_original>
// kernel: tpu_custom_call.1
$region0: #{tpu_custom_call.1}
  #allocation0 [shape = 'u32[]', space=smem, size = 0x4, offset = 0x4, fixed_abs, tag = 'smem constant byte address 0x4 - core index']
  #allocation1 [shape = 'u32[72,128]{1,0:T(1,128)}', space=vmem, size = 0x9000, scoped, tag = 'internal scratch']
  %s0 = inlined_call_operand.hbm [shape: f32[12,128], index: 0, kind: input, shape index: {}]
  %s1 = inlined_call_operand.hbm [shape: f32[12,1200], index: 1, kind: input, shape index: {}]
  %s2 = inlined_call_operand.hbm [shape: bf16[1200,128], index: 2, kind: input, shape index: {}]
  %s3 = inlined_call_operand.hbm [shape: bf16[128,128], index: 3, kind: input, shape index: {}]
  %s4 = inlined_call_operand.hbm [shape: f32[4,128], index: 4, kind: input, shape index: {}]
  %s5 = inlined_call_operand.hbm [shape: f32[12,128], index: 5, kind: output, shape index: {}]
  %s6 = sld [smem:[#allocation0]]
  $region50: #{tpu_custom_call.1} parent=0
    _
  %s8 = ssub.s32 1, %s6
  %s9 = scalar_select 0, %s8, %s6
  $region1: #{tpu_custom_call.1} parent=0
    #allocation2 [shape = 'u8[8192]{0}', space=vmem, size = 0x2000, scoped, tag = 'input window, operand 0, single buffered']
    #allocation3 [shape = 's32[1]{0}', space=sflag, size = 0x4, scoped, tag = 'scoped memory for tpu_custom_call.1']
    #allocation4 [shape = 's32[1]{0}', space=sflag, size = 0x4, scoped, tag = 'scoped memory for tpu_custom_call.1']
    #allocation5 [shape = 'u8[81920]{0}', space=vmem, size = 0x14000, scoped, tag = 'input window, operand 1, single buffered']
    #allocation6 [shape = 's32[1]{0}', space=sflag, size = 0x4, scoped, tag = 'scoped memory for tpu_custom_call.1']
    #allocation7 [shape = 'u8[307200]{0}', space=vmem, size = 0x4b000, scoped, tag = 'input window, operand 2, single buffered']
    #allocation8 [shape = 'u8[32768]{0}', space=vmem, size = 0x8000, scoped, tag = 'input window, operand 3, single buffered']
    #allocation9 [shape = 's32[1]{0}', space=sflag, size = 0x4, scoped, tag = 'scoped memory for tpu_custom_call.1']
    #allocation10 [shape = 'u8[2048]{0}', space=vmem, size = 0x800, scoped, tag = 'input window, operand 4, single buffered']
    #allocation11 [shape = 'u8[8192]{0}', space=vmem, size = 0x2000, scoped, tag = 'output window, operand 0, single buffered']
    %10 = vsyncpa [#allocation3], 0
    %11 = vsyncpa [#allocation6], 0
    %12 = vsyncpa [#allocation9], 0
    %13 = vsyncpa [#allocation4], 0
    // Predicated region
    $region2: #{tpu_custom_call.1} parent=1 // pred_check
      _
    $region3: #{tpu_custom_call.1} parent=1 // pred_check_branch
      %15 = sbr.rel (0) target = $region5
    $region4: #{tpu_custom_call.1} parent=1 // pred_region
      %17 = vsyncadd [#allocation3], 0
      %s18 = sshll.u32 %s0, 4
      %s19 = int_to_ptr.hbm [resolvable:$true] %s18
      %s20 = sshll.u32 [#allocation2], 4
      %s21 = int_to_ptr.vmem [resolvable:$true] %s20
      %26 = dma.hbm_to_vmem [thread:$0]  %s19, 256, %s21, [#allocation3], 128, 128, 8
    $region5: #{tpu_custom_call.1} parent=1 // pred_fallthru
      _
    // Predicated region
    $region6: #{tpu_custom_call.1} parent=1 // pred_check
      _
    $region7: #{tpu_custom_call.1} parent=1 // pred_check_branch
      %28 = sbr.rel (0) target = $region9
    $region8: #{tpu_custom_call.1} parent=1 // pred_region
      %30 = vsyncadd [#allocation6], 0
      %s31 = sshll.u32 %s1, 4
      %s32 = int_to_ptr.hbm [resolvable:$true] %s31
      %s33 = sshll.u32 [#allocation5], 4
      %s34 = int_to_ptr.vmem [resolvable:$true] %s33
      %39 = dma.hbm_to_vmem [thread:$0]  %s32, 2560, %s34, [#allocation6], 1280, 1280, 80
    $region9: #{tpu_custom_call.1} parent=1 // pred_fallthru
      _
    // Predicated region
    $region10: #{tpu_custom_call.1} parent=1 // pred_check
      _
    $region11: #{tpu_custom_call.1} parent=1 // pred_check_branch
      %41 = sbr.rel (0) target = $region13
    $region12: #{tpu_custom_call.1} parent=1 // pred_region
      %43 = vsyncadd [#allocation6], 0
      %s44 = sshll.u32 %s2, 4
      %s45 = int_to_ptr.hbm [resolvable:$true] %s44
      %s46 = sshll.u32 [#allocation7], 4
      %s47 = int_to_ptr.vmem [resolvable:$true] %s46
      %52 = dma.hbm_to_vmem [thread:$0]  %s45, 9600, %s47, [#allocation6], 64, 64, 4
    $region13: #{tpu_custom_call.1} parent=1 // pred_fallthru
      _
    // Predicated region
    $region14: #{tpu_custom_call.1} parent=1 // pred_check
      _
    $region15: #{tpu_custom_call.1} parent=1 // pred_check_branch
      %54 = sbr.rel (0) target = $region17
    $region16: #{tpu_custom_call.1} parent=1 // pred_region
      %56 = vsyncadd [#allocation9], 0
      %s57 = sshll.u32 %s3, 4
      %s58 = int_to_ptr.hbm [resolvable:$true] %s57
      %s59 = sshll.u32 [#allocation8], 4
      %s60 = int_to_ptr.vmem [resolvable:$true] %s59
      %65 = dma.hbm_to_vmem [thread:$0]  %s58, 1024, %s60, [#allocation9], 64, 64, 4
    $region17: #{tpu_custom_call.1} parent=1 // pred_fallthru
      _
    // Predicated region
    $region18: #{tpu_custom_call.1} parent=1 // pred_check
      _
    $region19: #{tpu_custom_call.1} parent=1 // pred_check_branch
      %67 = sbr.rel (0) target = $region21
    $region20: #{tpu_custom_call.1} parent=1 // pred_region
      %69 = vsyncadd [#allocation9], 0
      %s71 = sshll.u32 %s4, 4
      %s72 = int_to_ptr.hbm [resolvable:$true] %s71
      %s73 = sshll.u32 [#allocation10], 4
      %s74 = int_to_ptr.vmem [resolvable:$true] %s73
      %76 = dma.hbm_to_vmem [thread:$0]  %s72, 64, %s74, [#allocation9]
    $region21: #{tpu_custom_call.1} parent=1 // pred_fallthru
      _
    // Predicated region
    $region22: #{tpu_custom_call.1} parent=1 // pred_check
      _
    $region23: #{tpu_custom_call.1} parent=1 // pred_check_branch
      %78 = sbr.rel (0) target = $region25
    $region24: #{tpu_custom_call.1} parent=1 // pred_region
      %80 = dma.done [#allocation3], 256
    $region25: #{tpu_custom_call.1} parent=1 // pred_fallthru
      _
    // Predicated region
    $region26: #{tpu_custom_call.1} parent=1 // pred_check
      _
    $region27: #{tpu_custom_call.1} parent=1 // pred_check_branch
      %82 = sbr.rel (0) target = $region29
    $region28: #{tpu_custom_call.1} parent=1 // pred_region
      %84 = dma.done [#allocation6], 2560
    $region29: #{tpu_custom_call.1} parent=1 // pred_fallthru
      _
    // Predicated region
    $region30: #{tpu_custom_call.1} parent=1 // pred_check
      _
    $region31: #{tpu_custom_call.1} parent=1 // pred_check_branch
      %86 = sbr.rel (0) target = $region33
    $region32: #{tpu_custom_call.1} parent=1 // pred_region
      %88 = dma.done [#allocation6], 9600
    $region33: #{tpu_custom_call.1} parent=1 // pred_fallthru
      _
    // Predicated region
    $region34: #{tpu_custom_call.1} parent=1 // pred_check
      _
    $region35: #{tpu_custom_call.1} parent=1 // pred_check_branch
      %90 = sbr.rel (0) target = $region37
    $region36: #{tpu_custom_call.1} parent=1 // pred_region
      %92 = dma.done [#allocation9], 1024
    $region37: #{tpu_custom_call.1} parent=1 // pred_fallthru
      _
    // Predicated region
    $region38: #{tpu_custom_call.1} parent=1 // pred_check
      _
    $region39: #{tpu_custom_call.1} parent=1 // pred_check_branch
      %94 = sbr.rel (0) target = $region41
    $region40: #{tpu_custom_call.1} parent=1 // pred_region
      %96 = dma.done [#allocation9], 64
    $region41: #{tpu_custom_call.1} parent=1 // pred_fallthru
      _
    %v98 = vld [vmem:[#allocation2] sm:$0xff]
    %v99 = vld [vmem:[#allocation2 + $0x8] sm:$0xf]
    %v100 = vld [vmem:[#allocation10] sm:$0x1]
    %v101 = vld [vmem:[#allocation10 + $0x1] sm:$0x1]
    %v102 = vld [vmem:[#allocation10 + $0x2] sm:$0x1]
    %v103 = vld [vmem:[#allocation10 + $0x3] sm:$0x1]
    %v104 = vld [vmem:[#allocation5] sm:$0xff]
    %v105 = vld [vmem:[#allocation5 + $0x8] sm:$0xff]
    %v106 = vld [vmem:[#allocation5 + $0x10] sm:$0xff]
    %v107 = vld [vmem:[#allocation5 + $0x18] sm:$0xff]
    %v108 = vld [vmem:[#allocation5 + $0x20] sm:$0xff]
    %v109 = vld [vmem:[#allocation5 + $0x28] sm:$0xff]
    %v110 = vld [vmem:[#allocation5 + $0x30] sm:$0xff]
    %v111 = vld [vmem:[#allocation5 + $0x38] sm:$0xff]
    %v112 = vld [vmem:[#allocation5 + $0x40] sm:$0xff]
    %v113 = vld [vmem:[#allocation5 + $0x48] sm:$0xff]
    %v114 = vld [vmem:[#allocation5 + $0x50] sm:$0xf]
    %v115 = vld [vmem:[#allocation5 + $0x58] sm:$0xf]
    %v116 = vld [vmem:[#allocation5 + $0x60] sm:$0xf]
    %v117 = vld [vmem:[#allocation5 + $0x68] sm:$0xf]
    %v118 = vld [vmem:[#allocation5 + $0x70] sm:$0xf]
    %v119 = vld [vmem:[#allocation5 + $0x78] sm:$0xf]
    %v120 = vld [vmem:[#allocation5 + $0x80] sm:$0xf]
    %v121 = vld [vmem:[#allocation5 + $0x88] sm:$0xf]
    %v122 = vld [vmem:[#allocation5 + $0x90] sm:$0xf]
    %v123 = vld [vmem:[#allocation5 + $0x98] sm:$0xf]
    %v124 = vpack.c.bf16 %v114, %v104
    %v125 = vpack.c.bf16 %v115, %v105
    %v126 = vpack.c.bf16 %v116, %v106
    %v127 = vpack.c.bf16 %v117, %v107
    %v128 = vpack.c.bf16 %v118, %v108
    %v129 = vpack.c.bf16 %v119, %v109
    %v130 = vpack.c.bf16 %v120, %v110
    %v131 = vpack.c.bf16 %v121, %v111
    %v132 = vpack.c.bf16 %v122, %v112
    %v133 = vpack.c.bf16 %v123, %v113
    %v134 = vld [vmem:[#allocation7] sm:$0xf]
    %v135 = vld [vmem:[#allocation7 + $0x4] sm:$0xf]
    %v136 = vld [vmem:[#allocation7 + $0x8] sm:$0xf]
    %v137 = vld [vmem:[#allocation7 + $0xc] sm:$0xf]
    %v138 = vld [vmem:[#allocation7 + $0x10] sm:$0xf]
    %v139 = vld [vmem:[#allocation7 + $0x14] sm:$0xf]
    %v140 = vld [vmem:[#allocation7 + $0x18] sm:$0xf]
    %v141 = vld [vmem:[#allocation7 + $0x1c] sm:$0xf]
    %v142 = vld [vmem:[#allocation7 + $0x20] sm:$0xf]
    %v143 = vld [vmem:[#allocation7 + $0x24] sm:$0xf]
    %v144 = vld [vmem:[#allocation7 + $0x28] sm:$0xf]
    %v145 = vld [vmem:[#allocation7 + $0x2c] sm:$0xf]
    %v146 = vld [vmem:[#allocation7 + $0x30] sm:$0xf]
    %v147 = vld [vmem:[#allocation7 + $0x34] sm:$0xf]
    %v148 = vld [vmem:[#allocation7 + $0x38] sm:$0xf]
    %v149 = vld [vmem:[#allocation7 + $0x3c] sm:$0xf]
    %v150 = vld [vmem:[#allocation7 + $0x40] sm:$0xf]
    %v151 = vld [vmem:[#allocation7 + $0x44] sm:$0xf]
    %v152 = vld [vmem:[#allocation7 + $0x48] sm:$0xf]
    %v153 = vld [vmem:[#allocation7 + $0x4c] sm:$0xf]
    %v154 = vld [vmem:[#allocation7 + $0x50] sm:$0xf]
    %v155 = vld [vmem:[#allocation7 + $0x54] sm:$0xf]
    %v156 = vld [vmem:[#allocation7 + $0x58] sm:$0xf]
    %v157 = vld [vmem:[#allocation7 + $0x5c] sm:$0xf]
    %v158 = vld [vmem:[#allocation7 + $0x60] sm:$0xf]
    %v159 = vld [vmem:[#allocation7 + $0x64] sm:$0xf]
    %v160 = vld [vmem:[#allocation7 + $0x68] sm:$0xf]
    %v161 = vld [vmem:[#allocation7 + $0x6c] sm:$0xf]
    %v162 = vld [vmem:[#allocation7 + $0x70] sm:$0xf]
    %v163 = vld [vmem:[#allocation7 + $0x74] sm:$0xf]
    %v164 = vld [vmem:[#allocation7 + $0x78] sm:$0xf]
    %v165 = vld [vmem:[#allocation7 + $0x7c] sm:$0xf]
    %v166 = vld [vmem:[#allocation7 + $0x80] sm:$0xf]
    %v167 = vld [vmem:[#allocation7 + $0x84] sm:$0xf]
    %v168 = vld [vmem:[#allocation7 + $0x88] sm:$0xf]
    %v169 = vld [vmem:[#allocation7 + $0x8c] sm:$0xf]
    %v170 = vld [vmem:[#allocation7 + $0x90] sm:$0xf]
    %v171 = vld [vmem:[#allocation7 + $0x94] sm:$0xf]
    %v172 = vld [vmem:[#allocation7 + $0x98] sm:$0xf]
    %v173 = vld [vmem:[#allocation7 + $0x9c] sm:$0xf]
    %v174 = vld [vmem:[#allocation7 + $0xa0] sm:$0xf]
    %v175 = vld [vmem:[#allocation7 + $0xa4] sm:$0xf]
    %v176 = vld [vmem:[#allocation7 + $0xa8] sm:$0xf]
    %v177 = vld [vmem:[#allocation7 + $0xac] sm:$0xf]
    %v178 = vld [vmem:[#allocation7 + $0xb0] sm:$0xf]
    %v179 = vld [vmem:[#allocation7 + $0xb4] sm:$0xf]
    %v180 = vld [vmem:[#allocation7 + $0xb8] sm:$0xf]
    %v181 = vld [vmem:[#allocation7 + $0xbc] sm:$0xf]
    %v182 = vld [vmem:[#allocation7 + $0xc0] sm:$0xf]
    %v183 = vld [vmem:[#allocation7 + $0xc4] sm:$0xf]
    %v184 = vld [vmem:[#allocation7 + $0xc8] sm:$0xf]
    %v185 = vld [vmem:[#allocation7 + $0xcc] sm:$0xf]
    %v186 = vld [vmem:[#allocation7 + $0xd0] sm:$0xf]
    %v187 = vld [vmem:[#allocation7 + $0xd4] sm:$0xf]
    %v188 = vld [vmem:[#allocation7 + $0xd8] sm:$0xf]
    %v189 = vld [vmem:[#allocation7 + $0xdc] sm:$0xf]
    %v190 = vld [vmem:[#allocation7 + $0xe0] sm:$0xf]
    %v191 = vld [vmem:[#allocation7 + $0xe4] sm:$0xf]
    %v192 = vld [vmem:[#allocation7 + $0xe8] sm:$0xf]
    %v193 = vld [vmem:[#allocation7 + $0xec] sm:$0xf]
    %v194 = vld [vmem:[#allocation7 + $0xf0] sm:$0xf]
    %v195 = vld [vmem:[#allocation7 + $0xf4] sm:$0xf]
    %v196 = vld [vmem:[#allocation7 + $0xf8] sm:$0xf]
    %v197 = vld [vmem:[#allocation7 + $0xfc] sm:$0xf]
    %v198 = vld [vmem:[#allocation7 + $0x100] sm:$0xf]
    %v199 = vld [vmem:[#allocation7 + $0x104] sm:$0xf]
    %v200 = vld [vmem:[#allocation7 + $0x108] sm:$0xf]
    %v201 = vld [vmem:[#allocation7 + $0x10c] sm:$0xf]
    %v202 = vld [vmem:[#allocation7 + $0x110] sm:$0xf]
    %v203 = vld [vmem:[#allocation7 + $0x114] sm:$0xf]
    %v204 = vld [vmem:[#allocation7 + $0x118] sm:$0xf]
    %v205 = vld [vmem:[#allocation7 + $0x11c] sm:$0xf]
    %v206 = vld [vmem:[#allocation7 + $0x120] sm:$0xf]
    %v207 = vld [vmem:[#allocation7 + $0x124] sm:$0xf]
    %v208 = vld [vmem:[#allocation7 + $0x128] sm:$0xf]
    %v209 = vld [vmem:[#allocation7 + $0x12c] sm:$0xf]
    %v210 = vld [vmem:[#allocation7 + $0x130] sm:$0xf]
    %v211 = vld [vmem:[#allocation7 + $0x134] sm:$0xf]
    %v212 = vld [vmem:[#allocation7 + $0x138] sm:$0xf]
    %v213 = vld [vmem:[#allocation7 + $0x13c] sm:$0xf]
    %v214 = vld [vmem:[#allocation7 + $0x140] sm:$0xf]
    %v215 = vld [vmem:[#allocation7 + $0x144] sm:$0xf]
    %v216 = vld [vmem:[#allocation7 + $0x148] sm:$0xf]
    %v217 = vld [vmem:[#allocation7 + $0x14c] sm:$0xf]
    %v218 = vld [vmem:[#allocation7 + $0x150] sm:$0xf]
    %v219 = vld [vmem:[#allocation7 + $0x154] sm:$0xf]
    %v220 = vld [vmem:[#allocation7 + $0x158] sm:$0xf]
    %v221 = vld [vmem:[#allocation7 + $0x15c] sm:$0xf]
    %v222 = vld [vmem:[#allocation7 + $0x160] sm:$0xf]
    %v223 = vld [vmem:[#allocation7 + $0x164] sm:$0xf]
    %v224 = vld [vmem:[#allocation7 + $0x168] sm:$0xf]
    %v225 = vld [vmem:[#allocation7 + $0x16c] sm:$0xf]
    %v226 = vld [vmem:[#allocation7 + $0x170] sm:$0xf]
    %v227 = vld [vmem:[#allocation7 + $0x174] sm:$0xf]
    %v228 = vld [vmem:[#allocation7 + $0x178] sm:$0xf]
    %v229 = vld [vmem:[#allocation7 + $0x17c] sm:$0xf]
    %v230 = vld [vmem:[#allocation7 + $0x180] sm:$0xf]
    %v231 = vld [vmem:[#allocation7 + $0x184] sm:$0xf]
    %v232 = vld [vmem:[#allocation7 + $0x188] sm:$0xf]
    %v233 = vld [vmem:[#allocation7 + $0x18c] sm:$0xf]
    %v234 = vld [vmem:[#allocation7 + $0x190] sm:$0xf]
    %v235 = vld [vmem:[#allocation7 + $0x194] sm:$0xf]
    %v236 = vld [vmem:[#allocation7 + $0x198] sm:$0xf]
    %v237 = vld [vmem:[#allocation7 + $0x19c] sm:$0xf]
    %v238 = vld [vmem:[#allocation7 + $0x1a0] sm:$0xf]
    %v239 = vld [vmem:[#allocation7 + $0x1a4] sm:$0xf]
    %v240 = vld [vmem:[#allocation7 + $0x1a8] sm:$0xf]
    %v241 = vld [vmem:[#allocation7 + $0x1ac] sm:$0xf]
    %v242 = vld [vmem:[#allocation7 + $0x1b0] sm:$0xf]
    %v243 = vld [vmem:[#allocation7 + $0x1b4] sm:$0xf]
    %v244 = vld [vmem:[#allocation7 + $0x1b8] sm:$0xf]
    %v245 = vld [vmem:[#allocation7 + $0x1bc] sm:$0xf]
    %v246 = vld [vmem:[#allocation7 + $0x1c0] sm:$0xf]
    %v247 = vld [vmem:[#allocation7 + $0x1c4] sm:$0xf]
    %v248 = vld [vmem:[#allocation7 + $0x1c8] sm:$0xf]
    %v249 = vld [vmem:[#allocation7 + $0x1cc] sm:$0xf]
    %v250 = vld [vmem:[#allocation7 + $0x1d0] sm:$0xf]
    %v251 = vld [vmem:[#allocation7 + $0x1d4] sm:$0xf]
    %v252 = vld [vmem:[#allocation7 + $0x1d8] sm:$0xf]
    %v253 = vld [vmem:[#allocation7 + $0x1dc] sm:$0xf]
    %v254 = vld [vmem:[#allocation7 + $0x1e0] sm:$0xf]
    %v255 = vld [vmem:[#allocation7 + $0x1e4] sm:$0xf]
    %v256 = vld [vmem:[#allocation7 + $0x1e8] sm:$0xf]
    %v257 = vld [vmem:[#allocation7 + $0x1ec] sm:$0xf]
    %v258 = vld [vmem:[#allocation7 + $0x1f0] sm:$0xf]
    %v259 = vld [vmem:[#allocation7 + $0x1f4] sm:$0xf]
    %v260 = vld [vmem:[#allocation7 + $0x1f8] sm:$0xf]
    %v261 = vld [vmem:[#allocation7 + $0x1fc] sm:$0xf]
    %v262 = vld [vmem:[#allocation7 + $0x200] sm:$0xf]
    %v263 = vld [vmem:[#allocation7 + $0x204] sm:$0xf]
    %v264 = vld [vmem:[#allocation7 + $0x208] sm:$0xf]
    %v265 = vld [vmem:[#allocation7 + $0x20c] sm:$0xf]
    %v266 = vld [vmem:[#allocation7 + $0x210] sm:$0xf]
    %v267 = vld [vmem:[#allocation7 + $0x214] sm:$0xf]
    %v268 = vld [vmem:[#allocation7 + $0x218] sm:$0xf]
    %v269 = vld [vmem:[#allocation7 + $0x21c] sm:$0xf]
    %v270 = vld [vmem:[#allocation7 + $0x220] sm:$0xf]
    %v271 = vld [vmem:[#allocation7 + $0x224] sm:$0xf]
    %v272 = vld [vmem:[#allocation7 + $0x228] sm:$0xf]
    %v273 = vld [vmem:[#allocation7 + $0x22c] sm:$0xf]
    %v274 = vld [vmem:[#allocation7 + $0x230] sm:$0xf]
    %v275 = vld [vmem:[#allocation7 + $0x234] sm:$0xf]
    %v276 = vld [vmem:[#allocation7 + $0x238] sm:$0xf]
    %v277 = vld [vmem:[#allocation7 + $0x23c] sm:$0xf]
    %v278 = vld [vmem:[#allocation7 + $0x240] sm:$0xf]
    %v279 = vld [vmem:[#allocation7 + $0x244] sm:$0xf]
    %v280 = vld [vmem:[#allocation7 + $0x248] sm:$0xf]
    %v281 = vld [vmem:[#allocation7 + $0x24c] sm:$0xf]
    %v282 = vld [vmem:[#allocation7 + $0x250] sm:$0xf]
    %v283 = vld [vmem:[#allocation7 + $0x254] sm:$0xf]
    %v284 = vperm.slane %v100, 0
    %v435 = vunpack.c.l.b16 %v134
    %v436 = vunpack.c.l.b16 %v135
    %v437 = vunpack.c.l.b16 %v136
    %v438 = vunpack.c.l.b16 %v137
    %v439 = vunpack.c.l.b16 %v138
    %v440 = vunpack.c.l.b16 %v139
    %v441 = vunpack.c.l.b16 %v140
    %v442 = vunpack.c.l.b16 %v141
    %v443 = vunpack.c.l.b16 %v142
    %v444 = vunpack.c.l.b16 %v143
    %v445 = vunpack.c.l.b16 %v144
    %v446 = vunpack.c.l.b16 %v145
    %v447 = vunpack.c.l.b16 %v146
    %v448 = vunpack.c.l.b16 %v147
    %v449 = vunpack.c.l.b16 %v148
    %v450 = vunpack.c.l.b16 %v149
    %v451 = vunpack.c.l.b16 %v150
    %v452 = vunpack.c.l.b16 %v151
    %v453 = vunpack.c.l.b16 %v152
    %v454 = vunpack.c.l.b16 %v153
    %v455 = vunpack.c.l.b16 %v154
    %v456 = vunpack.c.l.b16 %v155
    %v457 = vunpack.c.l.b16 %v156
    %v458 = vunpack.c.l.b16 %v157
    %v459 = vunpack.c.l.b16 %v158
    %v460 = vunpack.c.l.b16 %v159
    %v461 = vunpack.c.l.b16 %v160
    %v462 = vunpack.c.l.b16 %v161
    %v463 = vunpack.c.l.b16 %v162
    %v464 = vunpack.c.l.b16 %v163
    %v465 = vunpack.c.l.b16 %v164
    %v466 = vunpack.c.l.b16 %v165
    %v467 = vunpack.c.l.b16 %v166
    %v468 = vunpack.c.l.b16 %v167
    %v469 = vunpack.c.l.b16 %v168
    %v470 = vunpack.c.l.b16 %v169
    %v471 = vunpack.c.l.b16 %v170
    %v472 = vunpack.c.l.b16 %v171
    %v473 = vunpack.c.l.b16 %v172
    %v474 = vunpack.c.l.b16 %v173
    %v475 = vunpack.c.l.b16 %v174
    %v476 = vunpack.c.l.b16 %v175
    %v477 = vunpack.c.l.b16 %v176
    %v478 = vunpack.c.l.b16 %v177
    %v479 = vunpack.c.l.b16 %v178
    %v480 = vunpack.c.l.b16 %v179
    %v481 = vunpack.c.l.b16 %v180
    %v482 = vunpack.c.l.b16 %v181
    %v483 = vunpack.c.l.b16 %v182
    %v484 = vunpack.c.l.b16 %v183
    %v485 = vunpack.c.l.b16 %v184
    %v486 = vunpack.c.l.b16 %v185
    %v487 = vunpack.c.l.b16 %v186
    %v488 = vunpack.c.l.b16 %v187
    %v489 = vunpack.c.l.b16 %v188
    %v490 = vunpack.c.l.b16 %v189
    %v491 = vunpack.c.l.b16 %v190
    %v492 = vunpack.c.l.b16 %v191
    %v493 = vunpack.c.l.b16 %v192
    %v494 = vunpack.c.l.b16 %v193
    %v495 = vunpack.c.l.b16 %v194
    %v496 = vunpack.c.l.b16 %v195
    %v497 = vunpack.c.l.b16 %v196
    %v498 = vunpack.c.l.b16 %v197
    %v499 = vunpack.c.l.b16 %v198
    %v500 = vunpack.c.l.b16 %v199
    %v501 = vunpack.c.l.b16 %v200
    %v502 = vunpack.c.l.b16 %v201
    %v503 = vunpack.c.l.b16 %v202
    %v504 = vunpack.c.l.b16 %v203
    %v505 = vunpack.c.l.b16 %v204
    %v506 = vunpack.c.l.b16 %v205
    %v507 = vunpack.c.l.b16 %v206
    %v508 = vunpack.c.l.b16 %v207
    %v509 = vunpack.c.l.b16 %v208
    %v510 = vunpack.c.l.b16 %v209
    %v511 = vunpack.c.l.b16 %v210
    %v512 = vunpack.c.l.b16 %v211
    %v513 = vunpack.c.l.b16 %v212
    %v514 = vunpack.c.l.b16 %v213
    %v515 = vunpack.c.l.b16 %v214
    %v516 = vunpack.c.l.b16 %v215
    %v517 = vunpack.c.l.b16 %v216
    %v518 = vunpack.c.l.b16 %v217
    %v519 = vunpack.c.l.b16 %v218
    %v520 = vunpack.c.l.b16 %v219
    %v521 = vunpack.c.l.b16 %v220
    %v522 = vunpack.c.l.b16 %v221
    %v523 = vunpack.c.l.b16 %v222
    %v524 = vunpack.c.l.b16 %v223
    %v525 = vunpack.c.l.b16 %v224
    %v526 = vunpack.c.l.b16 %v225
    %v527 = vunpack.c.l.b16 %v226
    %v528 = vunpack.c.l.b16 %v227
    %v529 = vunpack.c.l.b16 %v228
    %v530 = vunpack.c.l.b16 %v229
    %v531 = vunpack.c.l.b16 %v230
    %v532 = vunpack.c.l.b16 %v231
    %v533 = vunpack.c.l.b16 %v232
    %v534 = vunpack.c.l.b16 %v233
    %v535 = vunpack.c.l.b16 %v234
    %v536 = vunpack.c.l.b16 %v235
    %v537 = vunpack.c.l.b16 %v236
    %v538 = vunpack.c.l.b16 %v237
    %v539 = vunpack.c.l.b16 %v238
    %v540 = vunpack.c.l.b16 %v239
    %v541 = vunpack.c.l.b16 %v240
    %v542 = vunpack.c.l.b16 %v241
    %v543 = vunpack.c.l.b16 %v242
    %v544 = vunpack.c.l.b16 %v243
    %v545 = vunpack.c.l.b16 %v244
    %v546 = vunpack.c.l.b16 %v245
    %v547 = vunpack.c.l.b16 %v246
    %v548 = vunpack.c.l.b16 %v247
    %v549 = vunpack.c.l.b16 %v248
    %v550 = vunpack.c.l.b16 %v249
    %v551 = vunpack.c.l.b16 %v250
    %v552 = vunpack.c.l.b16 %v251
    %v553 = vunpack.c.l.b16 %v252
    %v554 = vunpack.c.l.b16 %v253
    %v555 = vunpack.c.l.b16 %v254
    %v556 = vunpack.c.l.b16 %v255
    %v557 = vunpack.c.l.b16 %v256
    %v558 = vunpack.c.l.b16 %v257
    %v559 = vunpack.c.l.b16 %v258
    %v560 = vunpack.c.l.b16 %v259
    %v561 = vunpack.c.l.b16 %v260
    %v562 = vunpack.c.l.b16 %v261
    %v563 = vunpack.c.l.b16 %v262
    %v564 = vunpack.c.l.b16 %v263
    %v565 = vunpack.c.l.b16 %v264
    %v566 = vunpack.c.l.b16 %v265
    %v567 = vunpack.c.l.b16 %v266
    %v568 = vunpack.c.l.b16 %v267
    %v569 = vunpack.c.l.b16 %v268
    %v570 = vunpack.c.l.b16 %v269
    %v571 = vunpack.c.l.b16 %v270
    %v572 = vunpack.c.l.b16 %v271
    %v573 = vunpack.c.l.b16 %v272
    %v574 = vunpack.c.l.b16 %v273
    %v575 = vunpack.c.l.b16 %v274
    %v576 = vunpack.c.l.b16 %v275
    %v577 = vunpack.c.l.b16 %v276
    %v578 = vunpack.c.l.b16 %v277
    %v579 = vunpack.c.l.b16 %v278
    %v580 = vunpack.c.l.b16 %v279
    %v581 = vunpack.c.l.b16 %v280
    %v582 = vunpack.c.l.b16 %v281
    %v583 = vunpack.c.l.b16 %v282
    %v584 = vunpack.c.l.b16 %v283
    %v585 = vpack.c.b16 %v436, %v435
    %v586 = vpack.c.b16 %v438, %v437
    %v587 = vpack.c.b16 %v440, %v439
    %v588 = vpack.c.b16 %v442, %v441
    %v589 = vpack.c.b16 %v444, %v443
    %v590 = vpack.c.b16 %v446, %v445
    %v591 = vpack.c.b16 %v448, %v447
    %v592 = vpack.c.b16 %v450, %v449
    %v593 = vpack.c.b16 %v452, %v451
    %v594 = vpack.c.b16 %v454, %v453
    %v595 = vpack.c.b16 %v456, %v455
    %v596 = vpack.c.b16 %v458, %v457
    %v597 = vpack.c.b16 %v460, %v459
    %v598 = vpack.c.b16 %v462, %v461
    %v599 = vpack.c.b16 %v464, %v463
    %v600 = vpack.c.b16 %v466, %v465
    %v601 = vpack.c.b16 %v468, %v467
    %v602 = vpack.c.b16 %v470, %v469
    %v603 = vpack.c.b16 %v472, %v471
    %v604 = vpack.c.b16 %v474, %v473
    %v605 = vpack.c.b16 %v476, %v475
    %v606 = vpack.c.b16 %v478, %v477
    %v607 = vpack.c.b16 %v480, %v479
    %v608 = vpack.c.b16 %v482, %v481
    %v609 = vpack.c.b16 %v484, %v483
    %v610 = vpack.c.b16 %v486, %v485
    %v611 = vpack.c.b16 %v488, %v487
    %v612 = vpack.c.b16 %v490, %v489
    %v613 = vpack.c.b16 %v492, %v491
    %v614 = vpack.c.b16 %v494, %v493
    %v615 = vpack.c.b16 %v496, %v495
    %v616 = vpack.c.b16 %v498, %v497
    %v617 = vpack.c.b16 %v500, %v499
    %v618 = vpack.c.b16 %v502, %v501
    %v619 = vpack.c.b16 %v504, %v503
    %v620 = vpack.c.b16 %v506, %v505
    %v621 = vpack.c.b16 %v508, %v507
    %v622 = vpack.c.b16 %v510, %v509
    %v623 = vpack.c.b16 %v512, %v511
    %v624 = vpack.c.b16 %v514, %v513
    %v625 = vpack.c.b16 %v516, %v515
    %v626 = vpack.c.b16 %v518, %v517
    %v627 = vpack.c.b16 %v520, %v519
    %v628 = vpack.c.b16 %v522, %v521
    %v629 = vpack.c.b16 %v524, %v523
    %v630 = vpack.c.b16 %v526, %v525
    %v631 = vpack.c.b16 %v528, %v527
    %v632 = vpack.c.b16 %v530, %v529
    %v633 = vpack.c.b16 %v532, %v531
    %v634 = vpack.c.b16 %v534, %v533
    %v635 = vpack.c.b16 %v536, %v535
    %v636 = vpack.c.b16 %v538, %v537
    %v637 = vpack.c.b16 %v540, %v539
    %v638 = vpack.c.b16 %v542, %v541
    %v639 = vpack.c.b16 %v544, %v543
    %v640 = vpack.c.b16 %v546, %v545
    %v641 = vpack.c.b16 %v548, %v547
    %v642 = vpack.c.b16 %v550, %v549
    %v643 = vpack.c.b16 %v552, %v551
    %v644 = vpack.c.b16 %v554, %v553
    %v645 = vpack.c.b16 %v556, %v555
    %v646 = vpack.c.b16 %v558, %v557
    %v647 = vpack.c.b16 %v560, %v559
    %v648 = vpack.c.b16 %v562, %v561
    %v649 = vpack.c.b16 %v564, %v563
    %v650 = vpack.c.b16 %v566, %v565
    %v651 = vpack.c.b16 %v568, %v567
    %v652 = vpack.c.b16 %v570, %v569
    %v653 = vpack.c.b16 %v572, %v571
    %v654 = vpack.c.b16 %v574, %v573
    %v655 = vpack.c.b16 %v576, %v575
    %v656 = vpack.c.b16 %v578, %v577
    %v657 = vpack.c.b16 %v580, %v579
    %v658 = vpack.c.b16 %v582, %v581
    %v659 = vpack.c.b16 %v584, %v583
    %vm735 = vcmask 392192
    %v737 = vsel %vm735, %v133, 0
    %739 = vmatpush.bf16.msra.mxu0 %v592
    %740 = vmatpush.bf16.msra.mxu0 %v591
    %741 = vmatpush.bf16.msra.mxu0 %v590
    %742 = vmatpush.bf16.msra.mxu0 %v589
    %743 = vmatpush.bf16.msra.mxu0 %v588
    %744 = vmatpush.bf16.msra.mxu0 %v587
    %745 = vmatpush.bf16.msra.mxu0 %v586
    %746 = vmatpush.bf16.msra.mxu0 %v585
    %747 = vmatmul.bf16.gmra.mxu0 %v124
    %v748 = vpop.f32.mrf.mxu0
    %v749 = vadd.f32 %v284, %v748
    %v750 = vpop.f32.mrf.mxu0
    %v751 = vadd.f32 %v284, %v750
    %752 = vdwg.mxu0
    %753 = vmatpush.bf16.msra.mxu0 %v600
    %754 = vmatpush.bf16.msra.mxu0 %v599
    %755 = vmatpush.bf16.msra.mxu0 %v598
    %756 = vmatpush.bf16.msra.mxu0 %v597
    %757 = vmatpush.bf16.msra.mxu0 %v596
    %758 = vmatpush.bf16.msra.mxu0 %v595
    %759 = vmatpush.bf16.msra.mxu0 %v594
    %760 = vmatpush.bf16.msra.mxu0 %v593
    %761 = vmatmul.bf16.gmra.mxu0 %v125
    %v762 = vpop.f32.mrf.mxu0
    %v763 = vadd.f32 %v749, %v762
    %v764 = vpop.f32.mrf.mxu0
    %v765 = vadd.f32 %v751, %v764
    %766 = vdwg.mxu0
    %767 = vmatpush.bf16.msra.mxu0 %v608
    %768 = vmatpush.bf16.msra.mxu0 %v607
    %769 = vmatpush.bf16.msra.mxu0 %v606
    %770 = vmatpush.bf16.msra.mxu0 %v605
    %771 = vmatpush.bf16.msra.mxu0 %v604
    %772 = vmatpush.bf16.msra.mxu0 %v603
    %773 = vmatpush.bf16.msra.mxu0 %v602
    %774 = vmatpush.bf16.msra.mxu0 %v601
    %775 = vmatmul.bf16.gmra.mxu0 %v126
    %v776 = vpop.f32.mrf.mxu0
    %v777 = vadd.f32 %v763, %v776
    %v778 = vpop.f32.mrf.mxu0
    %v779 = vadd.f32 %v765, %v778
    %780 = vdwg.mxu0
    %781 = vmatpush.bf16.msra.mxu0 %v616
    %782 = vmatpush.bf16.msra.mxu0 %v615
    %783 = vmatpush.bf16.msra.mxu0 %v614
    %784 = vmatpush.bf16.msra.mxu0 %v613
    %785 = vmatpush.bf16.msra.mxu0 %v612
    %786 = vmatpush.bf16.msra.mxu0 %v611
    %787 = vmatpush.bf16.msra.mxu0 %v610
    %788 = vmatpush.bf16.msra.mxu0 %v609
    %789 = vmatmul.bf16.gmra.mxu0 %v127
    %v790 = vpop.f32.mrf.mxu0
    %v791 = vadd.f32 %v777, %v790
    %v792 = vpop.f32.mrf.mxu0
    %v793 = vadd.f32 %v779, %v792
    %794 = vdwg.mxu0
    %795 = vmatpush.bf16.msra.mxu0 %v624
    %796 = vmatpush.bf16.msra.mxu0 %v623
    %797 = vmatpush.bf16.msra.mxu0 %v622
    %798 = vmatpush.bf16.msra.mxu0 %v621
    %799 = vmatpush.bf16.msra.mxu0 %v620
    %800 = vmatpush.bf16.msra.mxu0 %v619
    %801 = vmatpush.bf16.msra.mxu0 %v618
    %802 = vmatpush.bf16.msra.mxu0 %v617
    %803 = vmatmul.bf16.gmra.mxu0 %v128
    %v804 = vpop.f32.mrf.mxu0
    %v805 = vadd.f32 %v791, %v804
    %v806 = vpop.f32.mrf.mxu0
    %v807 = vadd.f32 %v793, %v806
    %808 = vdwg.mxu0
    %809 = vmatpush.bf16.msra.mxu0 %v632
    %810 = vmatpush.bf16.msra.mxu0 %v631
    %811 = vmatpush.bf16.msra.mxu0 %v630
    %812 = vmatpush.bf16.msra.mxu0 %v629
    %813 = vmatpush.bf16.msra.mxu0 %v628
    %814 = vmatpush.bf16.msra.mxu0 %v627
    %815 = vmatpush.bf16.msra.mxu0 %v626
    %816 = vmatpush.bf16.msra.mxu0 %v625
    %817 = vmatmul.bf16.gmra.mxu0 %v129
    %v818 = vpop.f32.mrf.mxu0
    %v819 = vadd.f32 %v805, %v818
    %v820 = vpop.f32.mrf.mxu0
    %v821 = vadd.f32 %v807, %v820
    %822 = vdwg.mxu0
    %823 = vmatpush.bf16.msra.mxu0 %v640
    %824 = vmatpush.bf16.msra.mxu0 %v639
    %825 = vmatpush.bf16.msra.mxu0 %v638
    %826 = vmatpush.bf16.msra.mxu0 %v637
    %827 = vmatpush.bf16.msra.mxu0 %v636
    %828 = vmatpush.bf16.msra.mxu0 %v635
    %829 = vmatpush.bf16.msra.mxu0 %v634
    %830 = vmatpush.bf16.msra.mxu0 %v633
    %831 = vmatmul.bf16.gmra.mxu0 %v130
    %v832 = vpop.f32.mrf.mxu0
    %v833 = vadd.f32 %v819, %v832
    %v834 = vpop.f32.mrf.mxu0
    %v835 = vadd.f32 %v821, %v834
    %836 = vdwg.mxu0
    %837 = vmatpush.bf16.msra.mxu0 %v648
    %838 = vmatpush.bf16.msra.mxu0 %v647
    %839 = vmatpush.bf16.msra.mxu0 %v646
    %840 = vmatpush.bf16.msra.mxu0 %v645
    %841 = vmatpush.bf16.msra.mxu0 %v644
    %842 = vmatpush.bf16.msra.mxu0 %v643
    %843 = vmatpush.bf16.msra.mxu0 %v642
    %844 = vmatpush.bf16.msra.mxu0 %v641
    %845 = vmatmul.bf16.gmra.mxu0 %v131
    %v846 = vpop.f32.mrf.mxu0
    %v847 = vadd.f32 %v833, %v846
    %v848 = vpop.f32.mrf.mxu0
    %v849 = vadd.f32 %v835, %v848
    %850 = vdwg.mxu0
    %851 = vmatpush.bf16.msra.mxu0 %v656
    %852 = vmatpush.bf16.msra.mxu0 %v655
    %853 = vmatpush.bf16.msra.mxu0 %v654
    %854 = vmatpush.bf16.msra.mxu0 %v653
    %855 = vmatpush.bf16.msra.mxu0 %v652
    %856 = vmatpush.bf16.msra.mxu0 %v651
    %857 = vmatpush.bf16.msra.mxu0 %v650
    %858 = vmatpush.bf16.msra.mxu0 %v649
    %859 = vmatmul.bf16.gmra.mxu0 %v132
    %v860 = vpop.f32.mrf.mxu0
    %v861 = vadd.f32 %v847, %v860
    %v862 = vpop.f32.mrf.mxu0
    %v863 = vadd.f32 %v849, %v862
    %864 = vdwg.mxu0
    %865 = vmatpush.bf16.msra.mxu0 0
    %866 = vmatpush.bf16.msra.mxu0 0
    %867 = vmatpush.bf16.msra.mxu0 0
    %868 = vmatpush.bf16.msra.mxu0 0
    %869 = vmatpush.bf16.msra.mxu0 0
    %870 = vmatpush.bf16.msra.mxu0 %v659
    %871 = vmatpush.bf16.msra.mxu0 %v658
    %872 = vmatpush.bf16.msra.mxu0 %v657
    %873 = vmatmul.bf16.gmra.mxu0 %v737
    %v874 = vpop.f32.mrf.mxu0
    %v875 = vadd.f32 %v861, %v874
    %v876 = vpop.f32.mrf.mxu0
    %v877 = vadd.f32 %v863, %v876
    %878 = vdwg.mxu0
    %879 = vadd.xlane.f32.xlu0 %v875
    %v880 = vpop.xlane.xlu0 %879
    %vm881 = vcmask 1043456
    %v882 = vsel %vm881, %v877, 0.0
    %883 = vadd.xlane.f32.xlu0 %v882
    %v884 = vpop.xlane.xlu0 %883
    %v885 = vrcp.pop 128.0
    %v886 = vmul.f32 128.0, %v885
    %v887 = vsub.f32 1.0, %v886
    %v888 = vmul.f32 %v885, %v887
    %v889 = vadd.f32 %v885, %v888
    %vm890 = vweird.f32 %v885
    %v891 = vsel %vm890, %v885, %v889
    %v892 = vmul.f32 %v880, %v891
    %v893 = vmul.f32 %v884, %v891
    %v894 = vsub.f32 %v875, %v892
    %v895 = vsub.f32 %v877, %v893
    %v896 = vmul.f32 %v894, %v894
    %v897 = vmul.f32 %v895, %v895
    %898 = vadd.xlane.f32.xlu0 %v896
    %v899 = vpop.xlane.xlu0 %898
    %v900 = vsel %vm881, %v897, 0.0
    %901 = vadd.xlane.f32.xlu0 %v900
    %v902 = vpop.xlane.xlu0 %901
    %v903 = vmul.f32 %v899, %v891
    %v904 = vmul.f32 %v902, %v891
    %v905 = vadd.f32 %v903, 1e-05
    %v906 = vadd.f32 %v904, 1e-05
    %v907 = vrsqrt.pop %v905
    %v908 = vmul.f32 %v907, %v905
    %v909 = vmul.f32 %v908, %v907
    %v910 = vmul.f32 0.5, %v909
    %v911 = vsub.f32 1.5, %v910
    %v912 = vmul.f32 %v907, %v911
    %vm913 = vweird.f32 %v905
    %vm914 = vweird.f32 %v907
    %vm915 = vmor %vm913, %vm914
    %v916 = vsel %vm915, %v907, %v912
    %v917 = vrsqrt.pop %v906
    %v918 = vmul.f32 %v917, %v906
    %v919 = vmul.f32 %v918, %v917
    %v920 = vmul.f32 0.5, %v919
    %v921 = vsub.f32 1.5, %v920
    %v922 = vmul.f32 %v917, %v921
    %vm923 = vweird.f32 %v906
    %vm924 = vweird.f32 %v917
    %vm925 = vmor %vm923, %vm924
    %v926 = vsel %vm925, %v917, %v922
    %v927 = vperm.slane %v101, 0
    %v928 = vmul.f32 %v927, %v916
    %v929 = vmul.f32 %v927, %v926
    %v930 = vmul.f32 %v894, %v928
    %v931 = vmul.f32 %v895, %v929
    %v932 = vperm.slane %v102, 0
    %v933 = vadd.f32 %v930, %v932
    %v934 = vadd.f32 %v931, %v932
    %v935 = vmax.f32 %v933, 0.0
    %v936 = vmax.f32 %v934, 0.0
    %v937 = vpack.c.bf16 %v99, %v98
    %v938 = vld [vmem:[#allocation8] sm:$0xf]
    %v939 = vld [vmem:[#allocation8 + $0x4] sm:$0xf]
    %v940 = vld [vmem:[#allocation8 + $0x8] sm:$0xf]
    %v941 = vld [vmem:[#allocation8 + $0xc] sm:$0xf]
    %v942 = vld [vmem:[#allocation8 + $0x10] sm:$0xf]
    %v943 = vld [vmem:[#allocation8 + $0x14] sm:$0xf]
    %v944 = vld [vmem:[#allocation8 + $0x18] sm:$0xf]
    %v945 = vld [vmem:[#allocation8 + $0x1c] sm:$0xf]
    %v946 = vld [vmem:[#allocation8 + $0x20] sm:$0xf]
    %v947 = vld [vmem:[#allocation8 + $0x24] sm:$0xf]
    %v948 = vld [vmem:[#allocation8 + $0x28] sm:$0xf]
    %v949 = vld [vmem:[#allocation8 + $0x2c] sm:$0xf]
    %v950 = vld [vmem:[#allocation8 + $0x30] sm:$0xf]
    %v951 = vld [vmem:[#allocation8 + $0x34] sm:$0xf]
    %v952 = vld [vmem:[#allocation8 + $0x38] sm:$0xf]
    %v953 = vld [vmem:[#allocation8 + $0x3c] sm:$0xf]
    %v954 = vperm.slane %v103, 0
    %v971 = vunpack.c.l.b16 %v938
    %v972 = vunpack.c.l.b16 %v939
    %v973 = vunpack.c.l.b16 %v940
    %v974 = vunpack.c.l.b16 %v941
    %v975 = vunpack.c.l.b16 %v942
    %v976 = vunpack.c.l.b16 %v943
    %v977 = vunpack.c.l.b16 %v944
    %v978 = vunpack.c.l.b16 %v945
    %v979 = vunpack.c.l.b16 %v946
    %v980 = vunpack.c.l.b16 %v947
    %v981 = vunpack.c.l.b16 %v948
    %v982 = vunpack.c.l.b16 %v949
    %v983 = vunpack.c.l.b16 %v950
    %v984 = vunpack.c.l.b16 %v951
    %v985 = vunpack.c.l.b16 %v952
    %v986 = vunpack.c.l.b16 %v953
    %v987 = vpack.c.b16 %v972, %v971
    %v988 = vpack.c.b16 %v974, %v973
    %v989 = vpack.c.b16 %v976, %v975
    %v990 = vpack.c.b16 %v978, %v977
    %v991 = vpack.c.b16 %v980, %v979
    %v992 = vpack.c.b16 %v982, %v981
    %v993 = vpack.c.b16 %v984, %v983
    %v994 = vpack.c.b16 %v986, %v985
    %1003 = vmatpush.bf16.msra.mxu0 %v994
    %1004 = vmatpush.bf16.msra.mxu0 %v993
    %1005 = vmatpush.bf16.msra.mxu0 %v992
    %1006 = vmatpush.bf16.msra.mxu0 %v991
    %1007 = vmatpush.bf16.msra.mxu0 %v990
    %1008 = vmatpush.bf16.msra.mxu0 %v989
    %1009 = vmatpush.bf16.msra.mxu0 %v988
    %1010 = vmatpush.bf16.msra.mxu0 %v987
    %1011 = vmatmul.bf16.gmra.mxu0 %v937
    %v1012 = vpop.f32.mrf.mxu0
    %v1013 = vadd.f32 %v954, %v1012
    %v1014 = vpop.f32.mrf.mxu0
    %v1015 = vadd.f32 %v954, %v1014
    %1016 = vdwg.mxu0
    %v1017 = vxor.u32 %v1013, 2147483648
    %v1018 = vxor.u32 %v1015, 2147483648
    %v1019 = vmul.f32 %v1017, 1.442695
    %v1020 = vpow.pop %v1019
    %v1021 = vmul.f32 %v1018, 1.442695
    %v1022 = vpow.pop %v1021
    %v1023 = vadd.f32 %v1020, 1.0
    %v1024 = vadd.f32 %v1022, 1.0
    %v1025 = vrcp.pop %v1023
    %v1026 = vmul.f32 %v1023, %v1025
    %v1027 = vsub.f32 1.0, %v1026
    %v1028 = vmul.f32 %v1025, %v1027
    %v1029 = vadd.f32 %v1025, %v1028
    %vm1030 = vweird.f32 %v1023
    %vm1031 = vweird.f32 %v1025
    %vm1032 = vmor %vm1030, %vm1031
    %v1033 = vsel %vm1032, %v1025, %v1029
    %v1034 = vand.u32 2147483647, %v1023
    %vm1035 = vcmp.eq.f32.partialorder %v1034, 8.507059e+37
    %v1036 = vand.u32 %v1023, 2147483648
    %v1037 = vor.u32 1.1754944e-38, %v1036
    %v1038 = vsel %vm1035, %v1037, %v1033
    %v1039 = vmul.f32 1.0, %v1038
    %v1040 = vrcp.pop %v1024
    %v1041 = vmul.f32 %v1024, %v1040
    %v1042 = vsub.f32 1.0, %v1041
    %v1043 = vmul.f32 %v1040, %v1042
    %v1044 = vadd.f32 %v1040, %v1043
    %vm1045 = vweird.f32 %v1024
    %vm1046 = vweird.f32 %v1040
    %vm1047 = vmor %vm1045, %vm1046
    %v1048 = vsel %vm1047, %v1040, %v1044
    %v1049 = vand.u32 2147483647, %v1024
    %vm1050 = vcmp.eq.f32.partialorder %v1049, 8.507059e+37
    %v1051 = vand.u32 %v1024, 2147483648
    %v1052 = vor.u32 1.1754944e-38, %v1051
    %v1053 = vsel %vm1050, %v1052, %v1048
    %v1054 = vmul.f32 1.0, %v1053
    %v1055 = vmul.f32 %v1039, %v935
    %v1056 = vmul.f32 %v1054, %v936
    %v1057 = vadd.f32 %v98, %v1055
    %v1058 = vadd.f32 %v99, %v1056
    %1059 = vst [vmem:[#allocation11] sm:$0xff] %v1057
    %1060 = vst [vmem:[#allocation11 + $0x8] sm:$0xf] %v1058
    // Predicated region
    $region42: #{tpu_custom_call.1} parent=1 // pred_check
      _
    $region43: #{tpu_custom_call.1} parent=1 // pred_check_branch
      %1062 = sbr.rel (0) target = $region45
    $region44: #{tpu_custom_call.1} parent=1 // pred_region
      %1064 = vsyncadd [#allocation4], 0
      %s1065 = sshll.u32 [#allocation11], 4
      %s1066 = int_to_ptr.vmem [resolvable:$true] %s1065
      %s1067 = sshll.u32 %s5, 4
      %s1068 = int_to_ptr.hbm [resolvable:$true] %s1067
      %1073 = dma.vmem_to_hbm [thread:$0]  %s1066, 256, %s1068, [#allocation4], 128, 128, 8
    $region45: #{tpu_custom_call.1} parent=1 // pred_fallthru
      _
    // Predicated region
    $region46: #{tpu_custom_call.1} parent=1 // pred_check
      _
    $region47: #{tpu_custom_call.1} parent=1 // pred_check_branch
      %1075 = sbr.rel (0) target = $region49
    $region48: #{tpu_custom_call.1} parent=1 // pred_region
      %1077 = dma.done [#allocation4], 256
    $region49: #{tpu_custom_call.1} parent=1 // pred_fallthru
      _
    %1078 = vsyncpa [#allocation3], 1
    %1079 = vsyncpa [#allocation6], 1
    %1080 = vsyncpa [#allocation9], 1
    %1081 = vsyncpa [#allocation4], 1

</llo_original>
